<compile_context>
chip_gen: v7x
topology: tpu7x:2x2x1
jax: 0.10.0
libtpu: 0.0.40
codegen_flags: <defaults>
</compile_context>

<pallas_src>
import jax
import jax.numpy as jnp
from jax import lax
from jax.experimental import pallas as pl
from jax.experimental.pallas import tpu as pltpu


# --------------------------------------------------------------------------- #
# Kernels
# --------------------------------------------------------------------------- #
def _qurot_kernel_blocked(x_ref, w_ref, qt_ref, brot_ref, o_ref, acc_ref):
    """Grid = (m_tiles, j_tiles); j blocks the intermediate (rotation) dim.

    x_ref:    (tm, H)  activation row tile (constant across j)
    w_ref:    (tj, H)  Linear weight rows [out, in] for this j block (contiguous)
    qt_ref:   (tj, H)  rows of Q.T for this j block (contiguous)
    brot_ref: (1, H)   bias folded through the rotation (b @ Q.T), f32
    o_ref:    (tm, H)  output tile
    acc_ref:  (tm, H)  f32 accumulator scratch
    """
    j = pl.program_id(1)

    @pl.when(j == 0)
    def _init():
        # Seed the accumulator with the rotated bias (no final-step VPU add).
        acc_ref[...] = jnp.broadcast_to(brot_ref[...], acc_ref.shape)

    # y = x @ W[j_block, :].T  -- contraction over last dims, contiguous blocks.
    y = lax.dot_general(
        x_ref[...], w_ref[...],
        dimension_numbers=(((1,), (1,)), ((), ())),
        preferred_element_type=jnp.float32)
    # Keep MXU operands in the single compute dtype (f32 accumulation retained).
    y = y.astype(x_ref.dtype)

    # acc += y @ Qt[j_block, :]  -- plain (tm,tj)@(tj,H) contraction.
    acc_ref[...] += lax.dot_general(
        y, qt_ref[...],
        dimension_numbers=(((1,), (0,)), ((), ())),
        preferred_element_type=jnp.float32)

    @pl.when(j == pl.num_programs(1) - 1)
    def _finalize():
        o_ref[...] = acc_ref[...].astype(o_ref.dtype)


def _qurot_kernel_fused(x_ref, w_ref, qt_ref, brot_ref, o_ref):
    """Single-j-step fast path: no accumulator scratch / zero-init / RMW."""
    y = lax.dot_general(
        x_ref[...], w_ref[...],
        dimension_numbers=(((1,), (1,)), ((), ())),
        preferred_element_type=jnp.float32)
    y = y.astype(x_ref.dtype)
    out = lax.dot_general(
        y, qt_ref[...],
        dimension_numbers=(((1,), (0,)), ((), ())),
        preferred_element_type=jnp.float32)
    o_ref[...] = (out + brot_ref[...]).astype(o_ref.dtype)


# --------------------------------------------------------------------------- #
# Wrapper
# --------------------------------------------------------------------------- #
def _round_up(v, m):
    return -(-v // m) * m


def _vmem_capacity_bytes():
    try:
        info = pltpu.get_tpu_info()
        cap = getattr(info, "vmem_capacity_bytes", None)
        if cap:
            return int(cap)
    except Exception:
        pass
    return 64 << 20  # conservative default (v7x per-TensorCore VMEM)


def _vmem_need(tm, tj, H, c_size, o_size, blocked):
    """Double-buffered tile footprint in bytes for one grid step."""
    need = 2 * tm * H * c_size          # x tile
    need += 2 * 2 * tj * H * c_size     # W + Qt tiles
    need += 2 * 1 * H * 4               # rotated bias (f32)
    need += 2 * tm * H * o_size         # output tile
    if blocked:
        need += tm * H * 4              # f32 accumulator scratch
    return need


def qurot_forward(x, W, b, Q, *, tm=None, tj=None, compute_dtype=None):
    """out = ((x @ W.T + b) @ Q.T).astype(x.dtype)

    x: [..., H]; W: [H, H] (PyTorch Linear layout [out, in]); b: [H]; Q: [H, H].
    compute_dtype: MXU operand dtype.  Defaults to bf16 if any operand is bf16,
    else f32 (closest match to the reference); pass jnp.bfloat16 explicitly for
    the full-rate MXU path.
    """
    orig_shape = x.shape
    H = orig_shape[-1]
    out_dtype = x.dtype
    assert W.shape == (H, H) and Q.shape == (H, H) and b.shape == (H,)

    if compute_dtype is None:
        bf16 = jnp.dtype(jnp.bfloat16)
        compute_dtype = (jnp.bfloat16
                         if any(jnp.dtype(a.dtype) == bf16 for a in (x, W, Q))
                         else jnp.float32)
    compute_dtype = jnp.dtype(compute_dtype)

    x2d = x.reshape(-1, H).astype(compute_dtype)
    M = x2d.shape[0]
    Wc = W.astype(compute_dtype)                   # [out, in] -> contiguous row blocks
    Qt = jnp.transpose(Q).astype(compute_dtype)    # one-time transpose -> row blocks
    # Bias folded through the rotation: (xW^T + b)Q^T = xW^TQ^T + (bQ^T).  Kept f32.
    b_rot = (b.astype(jnp.float32) @ Q.T.astype(jnp.float32)).reshape(1, H)

    c_size = compute_dtype.itemsize
    o_size = jnp.dtype(out_dtype).itemsize
    sub = 16 if compute_dtype == jnp.dtype(jnp.bfloat16) else 8

    cap = _vmem_capacity_bytes()
    budget = int(cap * 0.8)            # headroom for compiler-internal scratch

    # Rotation-dim tile candidates (block dims must be (8,128)-aligned or full).
    tj_cands = [H]                                      # weight residency first
    for c in (512, 256, 128):                           # 128 only as a last resort
        if c < H and H % c == 0:
            tj_cands.append(c)

    M_al = _round_up(M, sub)
    tm_cands = sorted({min(_round_up(c, sub), M_al)
                       for c in (1024, 768, 512, 384, 256, 128, 64, 32, 16, 8)},
                      reverse=True)

    if tm is None:
        tj_min = min(tj_cands)
        tm = tm_cands[-1]
        for cand in tm_cands:                           # biggest tm that fits
            if _vmem_need(cand, tj_min, H, c_size, o_size, tj_min != H) <= budget:
                tm = cand
                break
    else:
        tm = min(_round_up(tm, sub), M_al)

    if tj is None:
        tj = tj_cands[-1]
        for cand in tj_cands:                           # resident, then large tj
            if _vmem_need(tm, cand, H, c_size, o_size, cand != H) <= budget:
                tj = cand
                break
    assert H % tj == 0 and (tj == H or tj % 128 == 0), "tj must be 128-aligned or == H"
    j_tiles = H // tj

    m_tiles = -(-M // tm)
    M_pad = m_tiles * tm
    if M_pad != M:
        x2d = jnp.pad(x2d, ((0, M_pad - M), (0, 0)))

    need = _vmem_need(tm, tj, H, c_size, o_size, j_tiles > 1)
    vmem_limit = int(min(cap, max(32 << 20, int(need * 1.25) + (4 << 20))))

    # Streamed bytes: x read + out write + weights (re-streamed once per row tile
    # only when blocked over j) + rotated bias.
    w_passes = 1 if j_tiles == 1 else m_tiles
    cost = pl.CostEstimate(
        flops=4 * M_pad * H * H,
        transcendentals=0,
        bytes_accessed=int(M_pad * H * c_size + M_pad * H * o_size
                           + w_passes * 2 * H * H * c_size + H * 4))

    if j_tiles == 1:
        grid_spec = pltpu.PrefetchScalarGridSpec(
            num_scalar_prefetch=0,
            grid=(m_tiles,),
            in_specs=[
                pl.BlockSpec((tm, H), lambda i: (i, 0)),   # x row tile
                pl.BlockSpec((H, H), lambda i: (0, 0)),    # W (resident)
                pl.BlockSpec((H, H), lambda i: (0, 0)),    # Q.T (resident)
                pl.BlockSpec((1, H), lambda i: (0, 0)),    # rotated bias
            ],
            out_specs=pl.BlockSpec((tm, H), lambda i: (i, 0)),
        )
        kernel = _qurot_kernel_fused
        dim_sem = ("parallel",)
    else:
        grid_spec = pltpu.PrefetchScalarGridSpec(
            num_scalar_prefetch=0,
            grid=(m_tiles, j_tiles),
            in_specs=[
                pl.BlockSpec((tm, H), lambda i, j: (i, 0)),   # x (constant across j)
                pl.BlockSpec((tj, H), lambda i, j: (j, 0)),   # W rows for this j block
                pl.BlockSpec((tj, H), lambda i, j: (j, 0)),   # Q.T rows for this j block
                pl.BlockSpec((1, H), lambda i, j: (0, 0)),    # rotated bias
            ],
            out_specs=pl.BlockSpec((tm, H), lambda i, j: (i, 0)),
            scratch_shapes=[pltpu.VMEM((tm, H), jnp.float32)],
        )
        kernel = _qurot_kernel_blocked
        dim_sem = ("parallel", "arbitrary")

    out = pl.pallas_call(
        kernel,
        out_shape=jax.ShapeDtypeStruct((M_pad, H), out_dtype),
        grid_spec=grid_spec,
        compiler_params=pltpu.CompilerParams(
            dimension_semantics=dim_sem,
            vmem_limit_bytes=vmem_limit,
        ),
        cost_estimate=cost,
    )(x2d, Wc, Qt, b_rot)

    if M_pad != M:
        out = out[:M]
    return out.reshape(orig_shape)


if __name__ == "__main__":
    key = jax.random.PRNGKey(0)
    k_x, k_w, k_b, k_q = jax.random.split(key, 4)

    # --- check #1: f32 inputs, fused (resident-weights, j_tiles == 1) path ----
    B, S, H = 2, 8, 32
    x = jax.random.normal(k_x, (B, S, H), dtype=jnp.float32)
    W = jax.random.normal(k_w, (H, H), dtype=jnp.float32) * 0.1   # Linear weight [out, in]
    b = jax.random.normal(k_b, (H,), dtype=jnp.float32) * 0.01    # Linear bias
    Q, _ = jnp.linalg.qr(jax.random.normal(k_q, (H, H), dtype=jnp.float32))

    out = jax.block_until_ready(qurot_forward(x, W, b, Q))
    ref = ((x @ W.T + b) @ Q.T).astype(x.dtype)
    assert out.shape == (B, S, H) and out.dtype == x.dtype
    assert jnp.allclose(out, ref, atol=1e-4, rtol=1e-4), \
        float(jnp.max(jnp.abs(out - ref)))

    # --- check #2: bf16 fast path + blocked-j accumulator path ----------------
    H2 = 256
    x2 = jax.random.normal(k_x, (B, S, H2), dtype=jnp.bfloat16)
    W2 = jax.random.normal(k_w, (H2, H2), dtype=jnp.float32) * 0.05
    b2 = jax.random.normal(k_b, (H2,), dtype=jnp.float32) * 0.01
    Q2, _ = jnp.linalg.qr(jax.random.normal(k_q, (H2, H2), dtype=jnp.float32))

    out2 = jax.block_until_ready(
        qurot_forward(x2, W2, b2, Q2, tj=128, compute_dtype=jnp.bfloat16))
    ref2 = ((x2.astype(jnp.float32) @ W2.T + b2) @ Q2.T).astype(jnp.bfloat16)
    assert out2.shape == (B, S, H2) and out2.dtype == jnp.bfloat16
    err = float(jnp.max(jnp.abs(out2.astype(jnp.float32) - ref2.astype(jnp.float32))))
    assert err < 0.15, err

    print("KERNEL_OK")
</pallas_src>

<mosaic_0001>
module attributes {stable_mosaic.version = 11 : i64} {
  func.func @_qurot_kernel_fused(%arg0: i32, %arg1: memref<16x32xf32, #tpu.memory_space<vmem>>, %arg2: memref<32x32xf32, #tpu.memory_space<vmem>>, %arg3: memref<32x32xf32, #tpu.memory_space<vmem>>, %arg4: memref<1x32xf32, #tpu.memory_space<vmem>>, %arg5: memref<16x32xf32, #tpu.memory_space<vmem>>) attributes {dimension_semantics = [#tpu.dimension_semantics<parallel>], iteration_bounds = array<i64: 1>, scalar_prefetch = 0 : i64, scratch_operands = 0 : i64, tpu.core_type = #tpu.core_type<tc>, window_params = [{transform_indices = @transform_0, window_bounds = array<i64: 16, 32>}, {pipeline_mode = #tpu.pipeline_mode<synchronous>, transform_indices = @transform_1, window_bounds = array<i64: 32, 32>}, {pipeline_mode = #tpu.pipeline_mode<synchronous>, transform_indices = @transform_2, window_bounds = array<i64: 32, 32>}, {pipeline_mode = #tpu.pipeline_mode<synchronous>, transform_indices = @transform_3, window_bounds = array<i64: 1, 32>}, {transform_indices = @transform_4, window_bounds = array<i64: 16, 32>}]} {
    %c0 = arith.constant 0 : index
    %c0_0 = arith.constant 0 : index
    %0 = vector.load %arg1[%c0, %c0_0] : memref<16x32xf32, #tpu.memory_space<vmem>>, vector<16x32xf32>
    %c0_1 = arith.constant 0 : index
    %c0_2 = arith.constant 0 : index
    %1 = vector.load %arg2[%c0_1, %c0_2] : memref<32x32xf32, #tpu.memory_space<vmem>>, vector<32x32xf32>
    %cst = arith.constant dense<0.000000e+00> : vector<16x32xf32>
    %2 = tpu.matmul %0, %1, %cst {dimension_numbers = #tpu.dot_dimension_numbers<[1], [1], [0], [0], [0, 0, 1, 0], [], []>} : vector<16x32xf32>, vector<32x32xf32>, vector<16x32xf32> -> vector<16x32xf32>
    %c0_3 = arith.constant 0 : index
    %c0_4 = arith.constant 0 : index
    %3 = vector.load %arg3[%c0_3, %c0_4] : memref<32x32xf32, #tpu.memory_space<vmem>>, vector<32x32xf32>
    %cst_5 = arith.constant dense<0.000000e+00> : vector<16x32xf32>
    %4 = tpu.matmul %2, %3, %cst_5 {dimension_numbers = #tpu.dot_dimension_numbers<[1], [0], [0], [1], [0, 0, 1, 1], [], []>} : vector<16x32xf32>, vector<32x32xf32>, vector<16x32xf32> -> vector<16x32xf32>
    %c0_6 = arith.constant 0 : index
    %c0_7 = arith.constant 0 : index
    %5 = vector.load %arg4[%c0_6, %c0_7] : memref<1x32xf32, #tpu.memory_space<vmem>>, vector<1x32xf32>
    %6 = vector.broadcast %5 : vector<1x32xf32> to vector<16x32xf32>
    %7 = arith.addf %4, %6 : vector<16x32xf32>
    %c0_8 = arith.constant 0 : index
    %c0_9 = arith.constant 0 : index
    %8 = vector.load %arg5[%c0_8, %c0_9] : memref<16x32xf32, #tpu.memory_space<vmem>>, vector<16x32xf32>
    tpu.vector_store %arg5[%c0_8, %c0_9], %7 {strides = array<i32>} : memref<16x32xf32, #tpu.memory_space<vmem>>, vector<16x32xf32>,
    return
  }
  func.func @transform_0(%arg0: i32) -> (i32, i32) {
    %c0_i32 = arith.constant 0 : i32
    %c0_i32_0 = arith.constant 0 : i32
    return %arg0, %c0_i32 : i32, i32
  }
  func.func @transform_1(%arg0: i32) -> (i32, i32) {
    %c0_i32 = arith.constant 0 : i32
    %c0_i32_0 = arith.constant 0 : i32
    %c0_i32_1 = arith.constant 0 : i32
    return %c0_i32, %c0_i32_0 : i32, i32
  }
  func.func @transform_2(%arg0: i32) -> (i32, i32) {
    %c0_i32 = arith.constant 0 : i32
    %c0_i32_0 = arith.constant 0 : i32
    %c0_i32_1 = arith.constant 0 : i32
    return %c0_i32, %c0_i32_0 : i32, i32
  }
  func.func @transform_3(%arg0: i32) -> (i32, i32) {
    %c0_i32 = arith.constant 0 : i32
    %c0_i32_0 = arith.constant 0 : i32
    %c0_i32_1 = arith.constant 0 : i32
    return %c0_i32, %c0_i32_0 : i32, i32
  }
  func.func @transform_4(%arg0: i32) -> (i32, i32) {
    %c0_i32 = arith.constant 0 : i32
    %c0_i32_0 = arith.constant 0 : i32
    return %arg0, %c0_i32 : i32, i32
  }
}

</mosaic_0001>

<llo_original>
// kernel: tpu_custom_call.1
$region0: #{tpu_custom_call.1}
  #allocation0 [shape = 'u32[]', space=smem, size = 0x4, offset = 0x4, fixed_abs, tag = 'smem constant byte address 0x4 - core index']
  #allocation1 [shape = 'u32[144,128]{1,0:T(1,128)}', space=vmem, size = 0x12000, scoped, tag = 'internal scratch']
  %s0 = inlined_call_operand.hbm [shape: f32[16,32], index: 0, kind: input, shape index: {}]
  %s1 = inlined_call_operand.hbm [shape: f32[32,32], index: 1, kind: input, shape index: {}]
  %s2 = inlined_call_operand.hbm [shape: f32[32,32], index: 2, kind: input, shape index: {}]
  %s3 = inlined_call_operand.vmem [shape: f32[1,32], index: 3, kind: input, shape index: {}]
  %s4 = inlined_call_operand.hbm [shape: f32[16,32], index: 4, kind: output, shape index: {}]
  %s5 = sld [smem:[#allocation0]]
  $region38: #{tpu_custom_call.1} parent=0
    _
  %s7 = ssub.s32 1, %s5
  %s8 = scalar_select 0, %s7, %s5
  $region1: #{tpu_custom_call.1} parent=0
    #allocation2 [shape = 'u8[8192]{0}', space=vmem, size = 0x2000, scoped, tag = 'input window, operand 0, single buffered']
    #allocation3 [shape = 's32[1]{0}', space=sflag, size = 0x4, scoped, tag = 'scoped memory for tpu_custom_call.1']
    #allocation4 [shape = 's32[1]{0}', space=sflag, size = 0x4, scoped, tag = 'scoped memory for tpu_custom_call.1']
    #allocation5 [shape = 'u8[16384]{0}', space=vmem, size = 0x4000, scoped, tag = 'input window, operand 1, single buffered']
    #allocation6 [shape = 's32[1]{0}', space=sflag, size = 0x4, scoped, tag = 'scoped memory for tpu_custom_call.1']
    #allocation7 [shape = 'u8[16384]{0}', space=vmem, size = 0x4000, scoped, tag = 'input window, operand 2, single buffered']
    #allocation8 [shape = 'u8[8192]{0}', space=vmem, size = 0x2000, scoped, tag = 'output window, operand 0, single buffered']
    %9 = vsyncpa [#allocation3], 0
    %10 = vsyncpa [#allocation6], 0
    %11 = vsyncpa [#allocation4], 0
    // Predicated region
    $region2: #{tpu_custom_call.1} parent=1 // pred_check
      _
    $region3: #{tpu_custom_call.1} parent=1 // pred_check_branch
      %13 = sbr.rel (0) target = $region5
    $region4: #{tpu_custom_call.1} parent=1 // pred_region
      %s15 = ssub.s32 256, 256
      %16 = vsyncadd [#allocation3], %s15
      %s17 = sshll.u32 [#allocation2], 4
      %s18 = int_to_ptr.vmem [resolvable:$true] %s17
      %23 = dma.hbm_to_vmem [thread:$0]  %s0, 256, %s18, [#allocation3], 128, 128, 8
    $region5: #{tpu_custom_call.1} parent=1 // pred_fallthru
      _
    // Predicated region
    $region6: #{tpu_custom_call.1} parent=1 // pred_check
      _
    $region7: #{tpu_custom_call.1} parent=1 // pred_check_branch
      %25 = sbr.rel (0) target = $region9
    $region8: #{tpu_custom_call.1} parent=1 // pred_region
      %s27 = ssub.s32 512, 512
      %28 = vsyncadd [#allocation6], %s27
      %s29 = sshll.u32 [#allocation5], 4
      %s30 = int_to_ptr.vmem [resolvable:$true] %s29
      %35 = dma.hbm_to_vmem [thread:$0]  %s1, 512, %s30, [#allocation6], 128, 128, 8
    $region9: #{tpu_custom_call.1} parent=1 // pred_fallthru
      _
    // Predicated region
    $region10: #{tpu_custom_call.1} parent=1 // pred_check
      _
    $region11: #{tpu_custom_call.1} parent=1 // pred_check_branch
      %37 = sbr.rel (0) target = $region13
    $region12: #{tpu_custom_call.1} parent=1 // pred_region
      %s39 = ssub.s32 512, 512
      %40 = vsyncadd [#allocation6], %s39
      %s41 = sshll.u32 [#allocation7], 4
      %s42 = int_to_ptr.vmem [resolvable:$true] %s41
      %47 = dma.hbm_to_vmem [thread:$0]  %s2, 512, %s42, [#allocation6], 128, 128, 8
    $region13: #{tpu_custom_call.1} parent=1 // pred_fallthru
      _
    // Predicated region
    $region14: #{tpu_custom_call.1} parent=1 // pred_check
      _
    $region15: #{tpu_custom_call.1} parent=1 // pred_check_branch
      %49 = sbr.rel (0) target = $region17
    $region16: #{tpu_custom_call.1} parent=1 // pred_region
      _
    $region17: #{tpu_custom_call.1} parent=1 // pred_fallthru
      _
    // Predicated region
    $region18: #{tpu_custom_call.1} parent=1 // pred_check
      _
    $region19: #{tpu_custom_call.1} parent=1 // pred_check_branch
      %51 = sbr.rel (0) target = $region21
    $region20: #{tpu_custom_call.1} parent=1 // pred_region
      %52 = dma.done [#allocation3], 256
    $region21: #{tpu_custom_call.1} parent=1 // pred_fallthru
      _
    // Predicated region
    $region22: #{tpu_custom_call.1} parent=1 // pred_check
      _
    $region23: #{tpu_custom_call.1} parent=1 // pred_check_branch
      %54 = sbr.rel (0) target = $region25
    $region24: #{tpu_custom_call.1} parent=1 // pred_region
      %55 = dma.done [#allocation6], 512
    $region25: #{tpu_custom_call.1} parent=1 // pred_fallthru
      _
    // Predicated region
    $region26: #{tpu_custom_call.1} parent=1 // pred_check
      _
    $region27: #{tpu_custom_call.1} parent=1 // pred_check_branch
      %57 = sbr.rel (0) target = $region29
    $region28: #{tpu_custom_call.1} parent=1 // pred_region
      %58 = dma.done [#allocation6], 512
    $region29: #{tpu_custom_call.1} parent=1 // pred_fallthru
      _
    %v59 = vld [vmem:[#allocation2] sm:$0xff]
    %v60 = vld [vmem:[#allocation2 + $0x8] sm:$0xff]
    %v61 = vld [vmem:[#allocation5] sm:$0xff]
    %v62 = vld [vmem:[#allocation5 + $0x8] sm:$0xff]
    %v63 = vld [vmem:[#allocation5 + $0x10] sm:$0xff]
    %v64 = vld [vmem:[#allocation5 + $0x18] sm:$0xff]
    %vm65 = vcmask 261120
    %v67 = vsel %vm65, %v59, 0
    %v70 = vsel %vm65, %v60, 0
    %v73 = vsel %vm65, %v61, 0
    %v76 = vsel %vm65, %v62, 0
    %v79 = vsel %vm65, %v63, 0
    %v82 = vsel %vm65, %v64, 0
    %84 = vmatprep.subr.mxu0 0.0
    %85 = vmatpush1.xpose.msra.mxu0 %v73
    %86 = vmatprep.subr.mxu0 0.0
    %87 = vmatpush1.xpose.msra.mxu0 %v76
    %88 = vmatprep.subr.mxu0 0.0
    %89 = vmatpush1.xpose.msra.mxu0 %v79
    %90 = vmatprep.subr.mxu0 0.0
    %91 = vmatpush1.xpose.msra.mxu0 %v82
    %92 = vmatprep.subr.mxu0 0.0
    %93 = vmatpush1.xpose.msra.mxu0 0.0
    %94 = vmatprep.subr.mxu0 0.0
    %95 = vmatpush1.xpose.msra.mxu0 0.0
    %96 = vmatprep.subr.mxu0 0.0
    %97 = vmatpush1.xpose.msra.mxu0 0.0
    %98 = vmatprep.subr.mxu0 0.0
    %99 = vmatpush1.xpose.msra.mxu0 0.0
    %100 = vmatprep.subr.mxu0 0.0
    %101 = vmatpush1.xpose.msra.mxu0 0.0
    %102 = vmatprep.subr.mxu0 0.0
    %103 = vmatpush1.xpose.msra.mxu0 0.0
    %104 = vmatprep.subr.mxu0 0.0
    %105 = vmatpush1.xpose.msra.mxu0 0.0
    %106 = vmatprep.subr.mxu0 0.0
    %107 = vmatpush1.xpose.msra.mxu0 0.0
    %108 = vmatprep.subr.mxu0 0.0
    %109 = vmatpush1.xpose.msra.mxu0 0.0
    %110 = vmatprep.subr.mxu0 0.0
    %111 = vmatpush1.xpose.msra.mxu0 0.0
    %112 = vmatprep.subr.mxu0 0.0
    %113 = vmatpush1.xpose.msra.mxu0 0.0
    %114 = vmatprep.subr.mxu0 0.0
    %115 = vmatpush1.xpose.msra.mxu0 0.0
    %116 = vmatprep.subr.mxu0 0.0
    %117 = vmatpush1.xpose.msra.mxu0 0.0
    %118 = vmatprep.subr.mxu0 0.0
    %119 = vmatpush1.xpose.msra.mxu0 0.0
    %120 = vmatprep.subr.mxu0 0.0
    %121 = vmatpush1.xpose.msra.mxu0 0.0
    %122 = vmatprep.subr.mxu0 0.0
    %123 = vmatpush1.xpose.msra.mxu0 0.0
    %124 = vmatprep.subr.mxu0 0.0
    %125 = vmatpush1.xpose.msra.mxu0 0.0
    %126 = vmatprep.subr.mxu0 0.0
    %127 = vmatpush1.xpose.msra.mxu0 0.0
    %128 = vmatprep.subr.mxu0 0.0
    %129 = vmatpush1.xpose.msra.mxu0 0.0
    %130 = vmatprep.subr.mxu0 0.0
    %131 = vmatpush1.xpose.msra.mxu0 0.0
    %132 = vmatprep.subr.mxu0 0.0
    %133 = vmatpush1.xpose.msra.mxu0 0.0
    %134 = vmatprep.subr.mxu0 0.0
    %135 = vmatpush1.xpose.msra.mxu0 0.0
    %136 = vmatprep.subr.mxu0 0.0
    %137 = vmatpush1.xpose.msra.mxu0 0.0
    %138 = vmatprep.subr.mxu0 0.0
    %139 = vmatpush1.xpose.msra.mxu0 0.0
    %140 = vmatprep.subr.mxu0 0.0
    %141 = vmatpush1.xpose.msra.mxu0 0.0
    %142 = vmatprep.subr.mxu0 0.0
    %143 = vmatpush1.xpose.msra.mxu0 0.0
    %144 = vmatprep.subr.mxu0 0.0
    %145 = vmatpush1.xpose.msra.mxu0 0.0
    %146 = vmatprep.subr.mxu0 0.0
    %147 = vmatpush1.xpose.msra.mxu0 0.0
    %148 = vmatprep.mubr.f32.mxu0 0.0
    %149 = vmatmul.mubr.f32.gmra.mrb[0].mxu0 %v67
    %v150 = vpop.f32.mrb[0].mxu0
    %v151 = vadd.f32 0.0, %v150
    %v152 = vpop.f32.mrb[0].mxu0
    %153 = vmatprep.mubr.f32.mxu0 0.0
    %154 = vmatmul.mubr.f32.gmra.mrb[0].mxu0 %v70
    %v155 = vpop.f32.mrb[0].mxu0
    %v156 = vadd.f32 0.0, %v155
    %v157 = vpop.f32.mrb[0].mxu0
    %158 = vdwg.mxu0
    %v159 = vld [vmem:[#allocation7] sm:$0xff]
    %v160 = vld [vmem:[#allocation7 + $0x8] sm:$0xff]
    %v161 = vld [vmem:[#allocation7 + $0x10] sm:$0xff]
    %v162 = vld [vmem:[#allocation7 + $0x18] sm:$0xff]
    %v163 = vld [vmem:[%s3] sm:$0x1]
    %v165 = vlaneseq
    %v166 = vshrl.u32 %v165, 7
    %v167 = vsub.s32 0, %v166
    %v168 = vrot.slane %v163, %v167
    %v171 = vsel %vm65, %v151, 0
    %v174 = vsel %vm65, %v156, 0
    %176 = vmatprep.subr.mxu0 0.0
    %177 = vmatpush1.msra.mxu0 %v159
    %178 = vmatprep.subr.mxu0 0.0
    %179 = vmatpush1.msra.mxu0 %v160
    %180 = vmatprep.subr.mxu0 0.0
    %181 = vmatpush1.msra.mxu0 %v161
    %182 = vmatprep.subr.mxu0 0.0
    %183 = vmatpush1.msra.mxu0 %v162
    %184 = vmatprep.subr.mxu0 0.0
    %185 = vmatpush1.msra.mxu0 0.0
    %186 = vmatprep.subr.mxu0 0.0
    %187 = vmatpush1.msra.mxu0 0.0
    %188 = vmatprep.subr.mxu0 0.0
    %189 = vmatpush1.msra.mxu0 0.0
    %190 = vmatprep.subr.mxu0 0.0
    %191 = vmatpush1.msra.mxu0 0.0
    %192 = vmatprep.subr.mxu0 0.0
    %193 = vmatpush1.msra.mxu0 0.0
    %194 = vmatprep.subr.mxu0 0.0
    %195 = vmatpush1.msra.mxu0 0.0
    %196 = vmatprep.subr.mxu0 0.0
    %197 = vmatpush1.msra.mxu0 0.0
    %198 = vmatprep.subr.mxu0 0.0
    %199 = vmatpush1.msra.mxu0 0.0
    %200 = vmatprep.subr.mxu0 0.0
    %201 = vmatpush1.msra.mxu0 0.0
    %202 = vmatprep.subr.mxu0 0.0
    %203 = vmatpush1.msra.mxu0 0.0
    %204 = vmatprep.subr.mxu0 0.0
    %205 = vmatpush1.msra.mxu0 0.0
    %206 = vmatprep.subr.mxu0 0.0
    %207 = vmatpush1.msra.mxu0 0.0
    %208 = vmatprep.subr.mxu0 0.0
    %209 = vmatpush1.msra.mxu0 0.0
    %210 = vmatprep.subr.mxu0 0.0
    %211 = vmatpush1.msra.mxu0 0.0
    %212 = vmatprep.subr.mxu0 0.0
    %213 = vmatpush1.msra.mxu0 0.0
    %214 = vmatprep.subr.mxu0 0.0
    %215 = vmatpush1.msra.mxu0 0.0
    %216 = vmatprep.subr.mxu0 0.0
    %217 = vmatpush1.msra.mxu0 0.0
    %218 = vmatprep.subr.mxu0 0.0
    %219 = vmatpush1.msra.mxu0 0.0
    %220 = vmatprep.subr.mxu0 0.0
    %221 = vmatpush1.msra.mxu0 0.0
    %222 = vmatprep.subr.mxu0 0.0
    %223 = vmatpush1.msra.mxu0 0.0
    %224 = vmatprep.subr.mxu0 0.0
    %225 = vmatpush1.msra.mxu0 0.0
    %226 = vmatprep.subr.mxu0 0.0
    %227 = vmatpush1.msra.mxu0 0.0
    %228 = vmatprep.subr.mxu0 0.0
    %229 = vmatpush1.msra.mxu0 0.0
    %230 = vmatprep.subr.mxu0 0.0
    %231 = vmatpush1.msra.mxu0 0.0
    %232 = vmatprep.subr.mxu0 0.0
    %233 = vmatpush1.msra.mxu0 0.0
    %234 = vmatprep.subr.mxu0 0.0
    %235 = vmatpush1.msra.mxu0 0.0
    %236 = vmatprep.subr.mxu0 0.0
    %237 = vmatpush1.msra.mxu0 0.0
    %238 = vmatprep.subr.mxu0 0.0
    %239 = vmatpush1.msra.mxu0 0.0
    %240 = vmatprep.mubr.f32.mxu0 0.0
    %241 = vmatmul.mubr.f32.gmra.mrb[0].mxu0 %v171
    %v242 = vpop.f32.mrb[0].mxu0
    %v243 = vadd.f32 %v168, %v242
    %v244 = vpop.f32.mrb[0].mxu0
    %245 = vmatprep.mubr.f32.mxu0 0.0
    %246 = vmatmul.mubr.f32.gmra.mrb[0].mxu0 %v174
    %v247 = vpop.f32.mrb[0].mxu0
    %v248 = vadd.f32 %v168, %v247
    %v249 = vpop.f32.mrb[0].mxu0
    %250 = vdwg.mxu0
    %251 = vst.msk [vmem:[#allocation8] sm:$0xff] %vm65, %v243
    %252 = vst.msk [vmem:[#allocation8 + $0x8] sm:$0xff] %vm65, %v248
    // Predicated region
    $region30: #{tpu_custom_call.1} parent=1 // pred_check
      _
    $region31: #{tpu_custom_call.1} parent=1 // pred_check_branch
      %254 = sbr.rel (0) target = $region33
    $region32: #{tpu_custom_call.1} parent=1 // pred_region
      %s256 = ssub.s32 256, 256
      %257 = vsyncadd [#allocation4], %s256
      %s258 = sshll.u32 [#allocation8], 4
      %s259 = int_to_ptr.vmem [resolvable:$true] %s258
      %264 = dma.vmem_to_hbm [thread:$0]  %s259, 256, %s4, [#allocation4], 128, 128, 8
    $region33: #{tpu_custom_call.1} parent=1 // pred_fallthru
      _
    // Predicated region
    $region34: #{tpu_custom_call.1} parent=1 // pred_check
      _
    $region35: #{tpu_custom_call.1} parent=1 // pred_check_branch
      %266 = sbr.rel (0) target = $region37
    $region36: #{tpu_custom_call.1} parent=1 // pred_region
      %267 = dma.done [#allocation4], 256
    $region37: #{tpu_custom_call.1} parent=1 // pred_fallthru
      _
    %268 = vsyncpa [#allocation3], 1
    %269 = vsyncpa [#allocation6], 1
    %270 = vsyncpa [#allocation4], 1

</llo_original>
